<compile_context>
chip_gen: v7x
topology: tpu7x:2x2x1
jax: 0.10.0
libtpu: 0.0.40
codegen_flags: <defaults>
</compile_context>

<pallas_src>
import functools
import warnings

import jax
import jax.numpy as jnp
import numpy as np
from jax.experimental import pallas as pl
from jax.experimental.pallas import tpu as pltpu

warnings.filterwarnings("ignore", message="Some donated buffers were not usable")


def _round_up(n, m):
    return ((n + m - 1) // m) * m


def _sigmoid(x):
    # sigmoid(x) == 0.5 * (tanh(0.5 * x) + 1); keeps the whole nonlinearity on the
    # single EUP slot (one tanh) instead of exp + VPU divide.
    return 0.5 * (jnp.tanh(0.5 * x) + 1.0)


def decoder_step_kernel(x_ref, h_ref, c_ref, w_ih_ref, w_hh_ref, b_ref,
                        wout_ref, bout_ref, pred_ref, hout_ref, cout_ref):
    """One LSTM cell step (PyTorch gate order i, f, g, o) + output Linear.

    x_ref    : [bm, I]       input features (I = output_size)
    h_ref    : [bm, H]       previous hidden state (aliased with hout_ref buffer)
    c_ref    : [bm, H]       previous cell state   (aliased with cout_ref buffer)
    w_ih_ref : [I, 4H]       input->gates weight (transposed)
    w_hh_ref : [H, 4H]       hidden->gates weight (transposed), K = H is aligned
    b_ref    : [1, 4H]       combined bias (b_ih + b_hh)
    wout_ref : [H, O_pad]    linear head weight, transposed, lane-padded to 128
    bout_ref : [1, O_pad]    linear head bias, lane-padded
    pred_ref : [bm, O_pad]   lane-dense prediction output
    hout_ref : [bm, H]       new hidden state
    cout_ref : [bm, H]       new cell state
    """
    wdt = w_hh_ref.dtype                       # weight dtype (f32 or bf16)
    x = x_ref[...]
    h = h_ref[...]
    c = c_ref[...].astype(jnp.float32)         # read before cout_ref is written

    # Two clean MXU passes accumulated in f32: K=128 (aligned) and K=I (tiny).
    gates = jnp.dot(h.astype(wdt), w_hh_ref[...],
                    preferred_element_type=jnp.float32)
    gates = gates + jnp.dot(x.astype(wdt), w_ih_ref[...],
                            preferred_element_type=jnp.float32)
    gates = gates + b_ref[...].astype(jnp.float32)

    H = c.shape[-1]                            # 128 -> lane-aligned gate slices
    i_g = _sigmoid(gates[:, 0 * H:1 * H])
    f_g = _sigmoid(gates[:, 1 * H:2 * H])
    g_g = jnp.tanh(gates[:, 2 * H:3 * H])
    o_g = _sigmoid(gates[:, 3 * H:4 * H])

    c_new = f_g * c + i_g * g_g
    h_new = o_g * jnp.tanh(c_new)

    pred = jnp.dot(h_new.astype(wdt), wout_ref[...],
                   preferred_element_type=jnp.float32)
    pred = pred + bout_ref[...].astype(jnp.float32)

    pred_ref[...] = pred.astype(pred_ref.dtype)
    hout_ref[...] = h_new.astype(hout_ref.dtype)
    cout_ref[...] = c_new.astype(cout_ref.dtype)


def make_decoder_params(key, output_size, hidden_size, dtype=jnp.float32):
    """Deterministic params mirroring torch.nn.LSTM / Linear initialisation.

    dtype=jnp.bfloat16 stores the (MXU-side) weights in bf16 for full MXU rate;
    gate math and the state update stay f32 inside the kernel.
    """
    k = 1.0 / np.sqrt(hidden_size)
    keys = jax.random.split(key, 6)
    # torch weight_ih_l0: [4H, I]; we keep transposed [I, 4H] (and [H, 4H]).
    w_ih = jax.random.uniform(keys[0], (output_size, 4 * hidden_size), jnp.float32, -k, k)
    w_hh = jax.random.uniform(keys[1], (hidden_size, 4 * hidden_size), jnp.float32, -k, k)
    b_ih = jax.random.uniform(keys[2], (4 * hidden_size,), jnp.float32, -k, k)
    b_hh = jax.random.uniform(keys[3], (4 * hidden_size,), jnp.float32, -k, k)
    # torch Linear weight: [O, H]; we keep transposed [H, O] and pad O to 128 lanes.
    w_out = jax.random.uniform(keys[4], (hidden_size, output_size), jnp.float32, -k, k)
    b_out = jax.random.uniform(keys[5], (output_size,), jnp.float32, -k, k)

    o_pad = _round_up(output_size, 128)
    w_out_p = jnp.zeros((hidden_size, o_pad), jnp.float32).at[:, :output_size].set(w_out)
    b_out_p = jnp.zeros((1, o_pad), jnp.float32).at[:, :output_size].set(b_out)

    cast = lambda a: a.astype(dtype)
    return dict(
        w_ih=cast(w_ih),                              # [I, 4H]
        w_hh=cast(w_hh),                              # [H, 4H]
        b=cast((b_ih + b_hh).reshape(1, -1)),         # [1, 4H]
        w_out=cast(w_out_p), b_out=cast(b_out_p),     # lane-padded head
        w_out_ref=cast(w_out),                        # unpadded, for reference
        b_out_ref=cast(b_out.reshape(1, -1)),
    )


def _choose_batch_tile(B, block_b):
    """Batch tile: one block for small B; otherwise an even number of balanced,
    8-row-aligned blocks (so the 2 TensorCores on v7x get equal work)."""
    if B <= block_b:
        return B
    n = pl.cdiv(B, block_b)
    if n % 2:
        n += 1
    return min(_round_up(pl.cdiv(B, n), 8), B)


def _vmem_limit_bytes(bm, I, H, O_pad, act_bytes, param_bytes):
    # Double-buffered activation blocks (3 in + 3 out) + single-buffered weights.
    act = 2 * bm * ((I + 2 * H) + (O_pad + 2 * H)) * act_bytes
    wts = (I * 4 * H + H * 4 * H + 4 * H + H * O_pad + O_pad) * param_bytes
    est = act + wts + (4 << 20)          # headroom for compiler-internal scratch
    return int(min(max(est, 32 << 20), 48 << 20))


def decoder_forward(params, x, hidden, cell, block_b=2048, slice_prediction=True):
    """x: [B, O]; hidden, cell: [n_layers=1, B, H].
    Returns (prediction [1, B, O] (or [1, B, 128] if slice_prediction=False),
             hidden [1, B, H], cell [1, B, H]).

    For the in-place reuse of hidden/cell to be real, donate them at the jit
    boundary: jax.jit(decoder_forward, donate_argnums=(2, 3)).
    """
    # TODO(synk): n_layers > 1 LSTM stacking not implemented (module default is 1).
    assert hidden.shape[0] == 1 and cell.shape[0] == 1
    B, I = x.shape
    H = hidden.shape[-1]
    h2d = hidden.reshape(B, H)
    c2d = cell.reshape(B, H)
    O_pad = params["w_out"].shape[-1]
    O = params["w_out_ref"].shape[-1]

    bm = _choose_batch_tile(B, block_b)
    grid = (pl.cdiv(B, bm),)

    vmem_limit = _vmem_limit_bytes(bm, I, H, O_pad,
                                   x.dtype.itemsize,
                                   params["w_hh"].dtype.itemsize)

    resident = lambda i: (0, 0)           # weights stay VMEM-resident across blocks
    batch_blk = lambda i: (i, 0)

    pred_pad, h_new, c_new = pl.pallas_call(
        decoder_step_kernel,
        grid=grid,
        in_specs=[
            pl.BlockSpec((bm, I), batch_blk),                                  # x
            pl.BlockSpec((bm, H), batch_blk),                                  # h
            pl.BlockSpec((bm, H), batch_blk),                                  # c
            pl.BlockSpec((I, 4 * H), resident,
                         pipeline_mode=pl.Buffered(buffer_count=1)),           # W_ih
            pl.BlockSpec((H, 4 * H), resident,
                         pipeline_mode=pl.Buffered(buffer_count=1)),           # W_hh
            pl.BlockSpec((1, 4 * H), resident,
                         pipeline_mode=pl.Buffered(buffer_count=1)),           # bias
            pl.BlockSpec((H, O_pad), resident,
                         pipeline_mode=pl.Buffered(buffer_count=1)),           # W_out
            pl.BlockSpec((1, O_pad), resident,
                         pipeline_mode=pl.Buffered(buffer_count=1)),           # b_out
        ],
        out_specs=(
            pl.BlockSpec((bm, O_pad), batch_blk),     # pred (lane-dense store)
            pl.BlockSpec((bm, H), batch_blk),         # h_new
            pl.BlockSpec((bm, H), batch_blk),         # c_new
        ),
        out_shape=(
            jax.ShapeDtypeStruct((B, O_pad), x.dtype),
            jax.ShapeDtypeStruct((B, H), x.dtype),
            jax.ShapeDtypeStruct((B, H), x.dtype),
        ),
        # Reuse the recurrent-state buffers in place (h2d -> h_new, c2d -> c_new).
        input_output_aliases={1: 1, 2: 2},
        compiler_params=pltpu.CompilerParams(
            dimension_semantics=("parallel",),
            vmem_limit_bytes=vmem_limit),
    )(x, h2d, c2d, params["w_ih"], params["w_hh"], params["b"],
      params["w_out"], params["b_out"])

    # The kernel stores a lane-dense [B, 128] prediction; slicing back to O columns
    # costs one extra XLA pass — skip it (slice_prediction=False) if the consumer
    # can work on / fuse the padded prediction.
    pred = pred_pad[:, :O] if slice_prediction else pred_pad
    return (pred.reshape(1, B, pred.shape[-1]),
            h_new.reshape(1, B, H),
            c_new.reshape(1, B, H))


def decoder_forward_ref(params, x, hidden, cell):
    """Pure-JAX reference of the same math (for a correctness check)."""
    B, O = x.shape
    H = hidden.shape[-1]
    wdt = params["w_hh"].dtype
    h = hidden.reshape(B, H)
    c = cell.reshape(B, H)
    gates = (jnp.dot(h.astype(wdt), params["w_hh"], preferred_element_type=jnp.float32)
             + jnp.dot(x.astype(wdt), params["w_ih"], preferred_element_type=jnp.float32)
             + params["b"].astype(jnp.float32))
    i_g = jax.nn.sigmoid(gates[:, 0 * H:1 * H])
    f_g = jax.nn.sigmoid(gates[:, 1 * H:2 * H])
    g_g = jnp.tanh(gates[:, 2 * H:3 * H])
    o_g = jax.nn.sigmoid(gates[:, 3 * H:4 * H])
    c_new = f_g * c.astype(jnp.float32) + i_g * g_g
    h_new = o_g * jnp.tanh(c_new)
    pred = (jnp.dot(h_new.astype(wdt), params["w_out_ref"],
                    preferred_element_type=jnp.float32)
            + params["b_out_ref"].astype(jnp.float32))
    return (pred.reshape(1, B, O),
            h_new.reshape(1, B, H),
            c_new.reshape(1, B, H))


if __name__ == "__main__":
    batch = 2
    output_size = 5
    hidden_size = 128   # module default -> lane-aligned gate slices
    n_layers = 1

    key = jax.random.PRNGKey(0)
    kp, kx, kh, kc = jax.random.split(key, 4)

    x = jax.random.normal(kx, (batch, output_size), jnp.float32)
    hidden = jax.random.normal(kh, (n_layers, batch, hidden_size), jnp.float32)
    cell = jax.random.normal(kc, (n_layers, batch, hidden_size), jnp.float32)

    # Donate the recurrent state so input_output_aliases really reuses the buffers.
    fwd = jax.jit(functools.partial(decoder_forward, block_b=2048),
                  donate_argnums=(2, 3))

    # f32 weights (strict check) and bf16 weights (full MXU rate, looser check).
    for w_dtype, tol in ((jnp.float32, 1e-5), (jnp.bfloat16, 1e-2)):
        params = make_decoder_params(kp, output_size, hidden_size, dtype=w_dtype)
        # Run the reference first: hidden/cell copies are donated by the jit call.
        pred_r, h_r, c_r = decoder_forward_ref(params, x, hidden, cell)
        pred, h_new, c_new = fwd(params, x, jnp.copy(hidden), jnp.copy(cell))
        jax.block_until_ready((pred, h_new, c_new))
        assert pred.shape == (1, batch, output_size)
        assert h_new.shape == (n_layers, batch, hidden_size)
        assert c_new.shape == (n_layers, batch, hidden_size)
        np.testing.assert_allclose(np.asarray(pred), np.asarray(pred_r), rtol=tol, atol=tol)
        np.testing.assert_allclose(np.asarray(h_new), np.asarray(h_r), rtol=tol, atol=tol)
        np.testing.assert_allclose(np.asarray(c_new), np.asarray(c_r), rtol=tol, atol=tol)

    # Ragged batch-tile + aliased-state path: B=20 with block_b=8 -> bm=8, 3 blocks,
    # last block partial (masked stores into the aliased h/c buffers).
    fwd_ragged = jax.jit(functools.partial(decoder_forward, block_b=8),
                         donate_argnums=(2, 3))
    B2 = 20
    params = make_decoder_params(kp, output_size, hidden_size, dtype=jnp.float32)
    x2 = jax.random.normal(kx, (B2, output_size), jnp.float32)
    h2 = jax.random.normal(kh, (n_layers, B2, hidden_size), jnp.float32)
    c2 = jax.random.normal(kc, (n_layers, B2, hidden_size), jnp.float32)
    pred_r, h_r, c_r = decoder_forward_ref(params, x2, h2, c2)
    pred, h_new, c_new = fwd_ragged(params, x2, jnp.copy(h2), jnp.copy(c2))
    jax.block_until_ready((pred, h_new, c_new))
    np.testing.assert_allclose(np.asarray(pred), np.asarray(pred_r), rtol=1e-5, atol=1e-5)
    np.testing.assert_allclose(np.asarray(h_new), np.asarray(h_r), rtol=1e-5, atol=1e-5)
    np.testing.assert_allclose(np.asarray(c_new), np.asarray(c_r), rtol=1e-5, atol=1e-5)

    print("KERNEL_OK")
</pallas_src>

<mosaic_0001>
module attributes {stable_mosaic.version = 11 : i64} {
  func.func @decoder_step_kernel(%arg0: i32, %arg1: memref<2x5xf32, #tpu.memory_space<vmem>>, %arg2: memref<2x128xf32, #tpu.memory_space<vmem>>, %arg3: memref<2x128xf32, #tpu.memory_space<vmem>>, %arg4: memref<5x512xf32, #tpu.memory_space<vmem>>, %arg5: memref<128x512xf32, #tpu.memory_space<vmem>>, %arg6: memref<1x512xf32, #tpu.memory_space<vmem>>, %arg7: memref<128x128xf32, #tpu.memory_space<vmem>>, %arg8: memref<1x128xf32, #tpu.memory_space<vmem>>, %arg9: memref<2x128xf32, #tpu.memory_space<vmem>>, %arg10: memref<2x128xf32, #tpu.memory_space<vmem>>, %arg11: memref<2x128xf32, #tpu.memory_space<vmem>>) attributes {dimension_semantics = [#tpu.dimension_semantics<parallel>], iteration_bounds = array<i64: 1>, scalar_prefetch = 0 : i64, scratch_operands = 0 : i64, tpu.core_type = #tpu.core_type<tc>, window_params = [{transform_indices = @transform_0, window_bounds = array<i64: 2, 5>}, {transform_indices = @transform_1, window_bounds = array<i64: 2, 128>}, {transform_indices = @transform_2, window_bounds = array<i64: 2, 128>}, {pipeline_mode = #tpu.pipeline_mode<synchronous>, transform_indices = @transform_3, window_bounds = array<i64: 5, 512>}, {pipeline_mode = #tpu.pipeline_mode<synchronous>, transform_indices = @transform_4, window_bounds = array<i64: 128, 512>}, {pipeline_mode = #tpu.pipeline_mode<synchronous>, transform_indices = @transform_5, window_bounds = array<i64: 1, 512>}, {pipeline_mode = #tpu.pipeline_mode<synchronous>, transform_indices = @transform_6, window_bounds = array<i64: 128, 128>}, {pipeline_mode = #tpu.pipeline_mode<synchronous>, transform_indices = @transform_7, window_bounds = array<i64: 1, 128>}, {transform_indices = @transform_8, window_bounds = array<i64: 2, 128>}, {transform_indices = @transform_9, window_bounds = array<i64: 2, 128>}, {transform_indices = @transform_10, window_bounds = array<i64: 2, 128>}]} {
    %c0 = arith.constant 0 : index
    %c0_0 = arith.constant 0 : index
    %0 = vector.load %arg1[%c0, %c0_0] : memref<2x5xf32, #tpu.memory_space<vmem>>, vector<2x5xf32>
    %c0_1 = arith.constant 0 : index
    %c0_2 = arith.constant 0 : index
    %1 = vector.load %arg2[%c0_1, %c0_2] : memref<2x128xf32, #tpu.memory_space<vmem>>, vector<2x128xf32>
    %c0_3 = arith.constant 0 : index
    %c0_4 = arith.constant 0 : index
    %2 = vector.load %arg3[%c0_3, %c0_4] : memref<2x128xf32, #tpu.memory_space<vmem>>, vector<2x128xf32>
    %c0_5 = arith.constant 0 : index
    %c0_6 = arith.constant 0 : index
    %3 = vector.load %arg5[%c0_5, %c0_6] : memref<128x512xf32, #tpu.memory_space<vmem>>, vector<128x512xf32>
    %cst = arith.constant dense<0.000000e+00> : vector<2x512xf32>
    %4 = tpu.matmul %1, %3, %cst {dimension_numbers = #tpu.dot_dimension_numbers<[1], [0], [0], [1], [0, 0, 1, 1], [], []>} : vector<2x128xf32>, vector<128x512xf32>, vector<2x512xf32> -> vector<2x512xf32>
    %c0_7 = arith.constant 0 : index
    %c0_8 = arith.constant 0 : index
    %5 = vector.load %arg4[%c0_7, %c0_8] : memref<5x512xf32, #tpu.memory_space<vmem>>, vector<5x512xf32>
    %cst_9 = arith.constant dense<0.000000e+00> : vector<2x512xf32>
    %6 = tpu.matmul %0, %5, %cst_9 {dimension_numbers = #tpu.dot_dimension_numbers<[1], [0], [0], [1], [0, 0, 1, 1], [], []>} : vector<2x5xf32>, vector<5x512xf32>, vector<2x512xf32> -> vector<2x512xf32>
    %7 = arith.addf %4, %6 : vector<2x512xf32>
    %c0_10 = arith.constant 0 : index
    %c0_11 = arith.constant 0 : index
    %8 = vector.load %arg6[%c0_10, %c0_11] : memref<1x512xf32, #tpu.memory_space<vmem>>, vector<1x512xf32>
    %9 = vector.broadcast %8 : vector<1x512xf32> to vector<2x512xf32>
    %10 = arith.addf %7, %9 : vector<2x512xf32>
    %11 = vector.extract_strided_slice %10 {offsets = [0, 0], sizes = [2, 128], strides = [1, 1]} : vector<2x512xf32> to vector<2x128xf32>
    %cst_12 = arith.constant 5.000000e-01 : f32
    %12 = vector.broadcast %cst_12 : f32 to vector<2x128xf32>
    %13 = arith.mulf %12, %11 : vector<2x128xf32>
    %14 = math.tanh %13 : vector<2x128xf32>
    %cst_13 = arith.constant 1.000000e+00 : f32
    %15 = vector.broadcast %cst_13 : f32 to vector<2x128xf32>
    %16 = arith.addf %14, %15 : vector<2x128xf32>
    %cst_14 = arith.constant 5.000000e-01 : f32
    %17 = vector.broadcast %cst_14 : f32 to vector<2x128xf32>
    %18 = arith.mulf %17, %16 : vector<2x128xf32>
    %19 = vector.extract_strided_slice %10 {offsets = [0, 128], sizes = [2, 128], strides = [1, 1]} : vector<2x512xf32> to vector<2x128xf32>
    %cst_15 = arith.constant 5.000000e-01 : f32
    %20 = vector.broadcast %cst_15 : f32 to vector<2x128xf32>
    %21 = arith.mulf %20, %19 : vector<2x128xf32>
    %22 = math.tanh %21 : vector<2x128xf32>
    %cst_16 = arith.constant 1.000000e+00 : f32
    %23 = vector.broadcast %cst_16 : f32 to vector<2x128xf32>
    %24 = arith.addf %22, %23 : vector<2x128xf32>
    %cst_17 = arith.constant 5.000000e-01 : f32
    %25 = vector.broadcast %cst_17 : f32 to vector<2x128xf32>
    %26 = arith.mulf %25, %24 : vector<2x128xf32>
    %27 = vector.extract_strided_slice %10 {offsets = [0, 256], sizes = [2, 128], strides = [1, 1]} : vector<2x512xf32> to vector<2x128xf32>
    %28 = math.tanh %27 : vector<2x128xf32>
    %29 = vector.extract_strided_slice %10 {offsets = [0, 384], sizes = [2, 128], strides = [1, 1]} : vector<2x512xf32> to vector<2x128xf32>
    %cst_18 = arith.constant 5.000000e-01 : f32
    %30 = vector.broadcast %cst_18 : f32 to vector<2x128xf32>
    %31 = arith.mulf %30, %29 : vector<2x128xf32>
    %32 = math.tanh %31 : vector<2x128xf32>
    %cst_19 = arith.constant 1.000000e+00 : f32
    %33 = vector.broadcast %cst_19 : f32 to vector<2x128xf32>
    %34 = arith.addf %32, %33 : vector<2x128xf32>
    %cst_20 = arith.constant 5.000000e-01 : f32
    %35 = vector.broadcast %cst_20 : f32 to vector<2x128xf32>
    %36 = arith.mulf %35, %34 : vector<2x128xf32>
    %37 = arith.mulf %26, %2 : vector<2x128xf32>
    %38 = arith.mulf %18, %28 : vector<2x128xf32>
    %39 = arith.addf %37, %38 : vector<2x128xf32>
    %40 = math.tanh %39 : vector<2x128xf32>
    %41 = arith.mulf %36, %40 : vector<2x128xf32>
    %c0_21 = arith.constant 0 : index
    %c0_22 = arith.constant 0 : index
    %42 = vector.load %arg7[%c0_21, %c0_22] : memref<128x128xf32, #tpu.memory_space<vmem>>, vector<128x128xf32>
    %cst_23 = arith.constant dense<0.000000e+00> : vector<2x128xf32>
    %43 = tpu.matmul %41, %42, %cst_23 {dimension_numbers = #tpu.dot_dimension_numbers<[1], [0], [0], [1], [0, 0, 1, 1], [], []>} : vector<2x128xf32>, vector<128x128xf32>, vector<2x128xf32> -> vector<2x128xf32>
    %c0_24 = arith.constant 0 : index
    %c0_25 = arith.constant 0 : index
    %44 = vector.load %arg8[%c0_24, %c0_25] : memref<1x128xf32, #tpu.memory_space<vmem>>, vector<1x128xf32>
    %45 = vector.broadcast %44 : vector<1x128xf32> to vector<2x128xf32>
    %46 = arith.addf %43, %45 : vector<2x128xf32>
    %c0_26 = arith.constant 0 : index
    %c0_27 = arith.constant 0 : index
    %47 = vector.load %arg9[%c0_26, %c0_27] : memref<2x128xf32, #tpu.memory_space<vmem>>, vector<2x128xf32>
    tpu.vector_store %arg9[%c0_26, %c0_27], %46 {strides = array<i32>} : memref<2x128xf32, #tpu.memory_space<vmem>>, vector<2x128xf32>,
    %c0_28 = arith.constant 0 : index
    %c0_29 = arith.constant 0 : index
    %48 = vector.load %arg10[%c0_28, %c0_29] : memref<2x128xf32, #tpu.memory_space<vmem>>, vector<2x128xf32>
    tpu.vector_store %arg10[%c0_28, %c0_29], %41 {strides = array<i32>} : memref<2x128xf32, #tpu.memory_space<vmem>>, vector<2x128xf32>,
    %c0_30 = arith.constant 0 : index
    %c0_31 = arith.constant 0 : index
    %49 = vector.load %arg11[%c0_30, %c0_31] : memref<2x128xf32, #tpu.memory_space<vmem>>, vector<2x128xf32>
    tpu.vector_store %arg11[%c0_30, %c0_31], %39 {strides = array<i32>} : memref<2x128xf32, #tpu.memory_space<vmem>>, vector<2x128xf32>,
    return
  }
  func.func @transform_0(%arg0: i32) -> (i32, i32) {
    %c0_i32 = arith.constant 0 : i32
    %c0_i32_0 = arith.constant 0 : i32
    return %arg0, %c0_i32 : i32, i32
  }
  func.func @transform_1(%arg0: i32) -> (i32, i32) {
    %c0_i32 = arith.constant 0 : i32
    %c0_i32_0 = arith.constant 0 : i32
    return %arg0, %c0_i32 : i32, i32
  }
  func.func @transform_2(%arg0: i32) -> (i32, i32) {
    %c0_i32 = arith.constant 0 : i32
    %c0_i32_0 = arith.constant 0 : i32
    return %arg0, %c0_i32 : i32, i32
  }
  func.func @transform_3(%arg0: i32) -> (i32, i32) {
    %c0_i32 = arith.constant 0 : i32
    %c0_i32_0 = arith.constant 0 : i32
    %c0_i32_1 = arith.constant 0 : i32
    return %c0_i32, %c0_i32_0 : i32, i32
  }
  func.func @transform_4(%arg0: i32) -> (i32, i32) {
    %c0_i32 = arith.constant 0 : i32
    %c0_i32_0 = arith.constant 0 : i32
    %c0_i32_1 = arith.constant 0 : i32
    return %c0_i32, %c0_i32_0 : i32, i32
  }
  func.func @transform_5(%arg0: i32) -> (i32, i32) {
    %c0_i32 = arith.constant 0 : i32
    %c0_i32_0 = arith.constant 0 : i32
    %c0_i32_1 = arith.constant 0 : i32
    return %c0_i32, %c0_i32_0 : i32, i32
  }
  func.func @transform_6(%arg0: i32) -> (i32, i32) {
    %c0_i32 = arith.constant 0 : i32
    %c0_i32_0 = arith.constant 0 : i32
    %c0_i32_1 = arith.constant 0 : i32
    return %c0_i32, %c0_i32_0 : i32, i32
  }
  func.func @transform_7(%arg0: i32) -> (i32, i32) {
    %c0_i32 = arith.constant 0 : i32
    %c0_i32_0 = arith.constant 0 : i32
    %c0_i32_1 = arith.constant 0 : i32
    return %c0_i32, %c0_i32_0 : i32, i32
  }
  func.func @transform_8(%arg0: i32) -> (i32, i32) {
    %c0_i32 = arith.constant 0 : i32
    %c0_i32_0 = arith.constant 0 : i32
    return %arg0, %c0_i32 : i32, i32
  }
  func.func @transform_9(%arg0: i32) -> (i32, i32) {
    %c0_i32 = arith.constant 0 : i32
    %c0_i32_0 = arith.constant 0 : i32
    return %arg0, %c0_i32 : i32, i32
  }
  func.func @transform_10(%arg0: i32) -> (i32, i32) {
    %c0_i32 = arith.constant 0 : i32
    %c0_i32_0 = arith.constant 0 : i32
    return %arg0, %c0_i32 : i32, i32
  }
}

</mosaic_0001>

<llo_original>
// kernel: decoder_forward.1
$region0: #{decoder_forward.1}
  #allocation0 [shape = 'u32[]', space=smem, size = 0x4, offset = 0x4, fixed_abs, tag = 'smem constant byte address 0x4 - core index']
  #allocation1 [shape = 'u32[144,128]{1,0:T(1,128)}', space=vmem, size = 0x12000, scoped, tag = 'internal scratch']
  %s0 = inlined_call_operand.vmem [shape: f32[2,5], index: 0, kind: input, shape index: {}]
  %s1 = inlined_call_operand.vmem [shape: f32[2,128], index: 1, kind: input, shape index: {}, may-alias: {1,9}]
  %s2 = inlined_call_operand.vmem [shape: f32[2,128], index: 2, kind: input, shape index: {}, may-alias: {2,10}]
  %s3 = inlined_call_operand.hbm [shape: f32[5,512], index: 3, kind: input, shape index: {}]
  %s4 = inlined_call_operand.hbm [shape: f32[128,512], index: 4, kind: input, shape index: {}]
  %s5 = inlined_call_operand.vmem [shape: f32[1,512], index: 5, kind: input, shape index: {}]
  %s6 = inlined_call_operand.hbm [shape: f32[128,128], index: 6, kind: input, shape index: {}]
  %s7 = inlined_call_operand.vmem [shape: f32[1,128], index: 7, kind: input, shape index: {}]
  %s8 = inlined_call_operand.vmem [shape: f32[2,128], index: 8, kind: output, shape index: {0}]
  %s9 = inlined_call_operand.vmem [shape: f32[2,128], index: 9, kind: output, shape index: {1}, may-alias: {1,9}]
  %s10 = inlined_call_operand.vmem [shape: f32[2,128], index: 10, kind: output, shape index: {2}, may-alias: {2,10}]
  %11 = xla_tuple %s8, %s9, %s10
  %s12 = sld [smem:[#allocation0]]
  $region70: #{decoder_forward.1} parent=0
    _
  %s14 = ssub.s32 1, %s12
  %s15 = scalar_select 0, %s14, %s12
  $region1: #{decoder_forward.1} parent=0
    #allocation2 [shape = 'u8[16384]{0}', space=vmem, size = 0x4000, scoped, tag = 'input window, operand 3, single buffered']
    #allocation3 [shape = 's32[1]{0}', space=sflag, size = 0x4, scoped, tag = 'scoped memory for decoder_forward.1']
    #allocation4 [shape = 'u8[262144]{0}', space=vmem, size = 0x40000, scoped, tag = 'input window, operand 4, single buffered']
    #allocation5 [shape = 's32[1]{0}', space=sflag, size = 0x4, scoped, tag = 'scoped memory for decoder_forward.1']
    #allocation6 [shape = 'u8[65536]{0}', space=vmem, size = 0x10000, scoped, tag = 'input window, operand 6, single buffered']
    %16 = vsyncpa [#allocation3], 0
    %17 = vsyncpa [#allocation5], 0
    // Predicated region
    $region2: #{decoder_forward.1} parent=1 // pred_check
      _
    $region3: #{decoder_forward.1} parent=1 // pred_check_branch
      %19 = sbr.rel (0) target = $region5
    $region4: #{decoder_forward.1} parent=1 // pred_region
      _
    $region5: #{decoder_forward.1} parent=1 // pred_fallthru
      _
    // Predicated region
    $region6: #{decoder_forward.1} parent=1 // pred_check
      _
    $region7: #{decoder_forward.1} parent=1 // pred_check_branch
      %21 = sbr.rel (0) target = $region9
    $region8: #{decoder_forward.1} parent=1 // pred_region
      _
    $region9: #{decoder_forward.1} parent=1 // pred_fallthru
      _
    // Predicated region
    $region10: #{decoder_forward.1} parent=1 // pred_check
      _
    $region11: #{decoder_forward.1} parent=1 // pred_check_branch
      %23 = sbr.rel (0) target = $region13
    $region12: #{decoder_forward.1} parent=1 // pred_region
      _
    $region13: #{decoder_forward.1} parent=1 // pred_fallthru
      _
    // Predicated region
    $region14: #{decoder_forward.1} parent=1 // pred_check
      _
    $region15: #{decoder_forward.1} parent=1 // pred_check_branch
      %25 = sbr.rel (0) target = $region17
    $region16: #{decoder_forward.1} parent=1 // pred_region
      %s27 = ssub.s32 512, 512
      %28 = vsyncadd [#allocation3], %s27
      %s30 = sshll.u32 [#allocation2], 4
      %s31 = int_to_ptr.vmem [resolvable:$true] %s30
      %33 = dma.hbm_to_vmem [thread:$0]  %s3, 512, %s31, [#allocation3]
    $region17: #{decoder_forward.1} parent=1 // pred_fallthru
      _
    // Predicated region
    $region18: #{decoder_forward.1} parent=1 // pred_check
      _
    $region19: #{decoder_forward.1} parent=1 // pred_check_branch
      %35 = sbr.rel (0) target = $region21
    $region20: #{decoder_forward.1} parent=1 // pred_region
      %s37 = ssub.s32 8192, 8192
      %38 = vsyncadd [#allocation5], %s37
      %s39 = sshll.u32 [#allocation4], 4
      %s40 = int_to_ptr.vmem [resolvable:$true] %s39
      %45 = dma.hbm_to_vmem [thread:$0]  %s4, 8192, %s40, [#allocation5], 512, 512, 32
    $region21: #{decoder_forward.1} parent=1 // pred_fallthru
      _
    // Predicated region
    $region22: #{decoder_forward.1} parent=1 // pred_check
      _
    $region23: #{decoder_forward.1} parent=1 // pred_check_branch
      %47 = sbr.rel (0) target = $region25
    $region24: #{decoder_forward.1} parent=1 // pred_region
      _
    $region25: #{decoder_forward.1} parent=1 // pred_fallthru
      _
    // Predicated region
    $region26: #{decoder_forward.1} parent=1 // pred_check
      _
    $region27: #{decoder_forward.1} parent=1 // pred_check_branch
      %49 = sbr.rel (0) target = $region29
    $region28: #{decoder_forward.1} parent=1 // pred_region
      %s51 = ssub.s32 2048, 2048
      %52 = vsyncadd [#allocation5], %s51
      %s53 = sshll.u32 [#allocation6], 4
      %s54 = int_to_ptr.vmem [resolvable:$true] %s53
      %59 = dma.hbm_to_vmem [thread:$0]  %s6, 2048, %s54, [#allocation5], 128, 128, 8
    $region29: #{decoder_forward.1} parent=1 // pred_fallthru
      _
    // Predicated region
    $region30: #{decoder_forward.1} parent=1 // pred_check
      _
    $region31: #{decoder_forward.1} parent=1 // pred_check_branch
      %61 = sbr.rel (0) target = $region33
    $region32: #{decoder_forward.1} parent=1 // pred_region
      _
    $region33: #{decoder_forward.1} parent=1 // pred_fallthru
      _
    // Predicated region
    $region34: #{decoder_forward.1} parent=1 // pred_check
      _
    $region35: #{decoder_forward.1} parent=1 // pred_check_branch
      %63 = sbr.rel (0) target = $region37
    $region36: #{decoder_forward.1} parent=1 // pred_region
      %64 = dma.done [#allocation3], 512
    $region37: #{decoder_forward.1} parent=1 // pred_fallthru
      _
    // Predicated region
    $region38: #{decoder_forward.1} parent=1 // pred_check
      _
    $region39: #{decoder_forward.1} parent=1 // pred_check_branch
      %66 = sbr.rel (0) target = $region41
    $region40: #{decoder_forward.1} parent=1 // pred_region
      %67 = dma.done [#allocation5], 8192
    $region41: #{decoder_forward.1} parent=1 // pred_fallthru
      _
    // Predicated region
    $region42: #{decoder_forward.1} parent=1 // pred_check
      _
    $region43: #{decoder_forward.1} parent=1 // pred_check_branch
      %69 = sbr.rel (0) target = $region45
    $region44: #{decoder_forward.1} parent=1 // pred_region
      %70 = dma.done [#allocation5], 2048
    $region45: #{decoder_forward.1} parent=1 // pred_fallthru
      _
    %v71 = vld [vmem:[%s0] sm:$0x3]
    %v72 = vld [vmem:[%s1] sm:$0x3]
    %v73 = vld [vmem:[%s2] sm:$0x3]
    %v74 = vld [vmem:[#allocation4] sm:$0xff]
    %v75 = vld [vmem:[#allocation4 + $0x8] sm:$0xff]
    %v76 = vld [vmem:[#allocation4 + $0x10] sm:$0xff]
    %v77 = vld [vmem:[#allocation4 + $0x18] sm:$0xff]
    %v78 = vld [vmem:[#allocation4 + $0x20] sm:$0xff]
    %v79 = vld [vmem:[#allocation4 + $0x28] sm:$0xff]
    %v80 = vld [vmem:[#allocation4 + $0x30] sm:$0xff]
    %v81 = vld [vmem:[#allocation4 + $0x38] sm:$0xff]
    %v82 = vld [vmem:[#allocation4 + $0x40] sm:$0xff]
    %v83 = vld [vmem:[#allocation4 + $0x48] sm:$0xff]
    %v84 = vld [vmem:[#allocation4 + $0x50] sm:$0xff]
    %v85 = vld [vmem:[#allocation4 + $0x58] sm:$0xff]
    %v86 = vld [vmem:[#allocation4 + $0x60] sm:$0xff]
    %v87 = vld [vmem:[#allocation4 + $0x68] sm:$0xff]
    %v88 = vld [vmem:[#allocation4 + $0x70] sm:$0xff]
    %v89 = vld [vmem:[#allocation4 + $0x78] sm:$0xff]
    %v90 = vld [vmem:[#allocation4 + $0x80] sm:$0xff]
    %v91 = vld [vmem:[#allocation4 + $0x88] sm:$0xff]
    %v92 = vld [vmem:[#allocation4 + $0x90] sm:$0xff]
    %v93 = vld [vmem:[#allocation4 + $0x98] sm:$0xff]
    %v94 = vld [vmem:[#allocation4 + $0xa0] sm:$0xff]
    %v95 = vld [vmem:[#allocation4 + $0xa8] sm:$0xff]
    %v96 = vld [vmem:[#allocation4 + $0xb0] sm:$0xff]
    %v97 = vld [vmem:[#allocation4 + $0xb8] sm:$0xff]
    %v98 = vld [vmem:[#allocation4 + $0xc0] sm:$0xff]
    %v99 = vld [vmem:[#allocation4 + $0xc8] sm:$0xff]
    %v100 = vld [vmem:[#allocation4 + $0xd0] sm:$0xff]
    %v101 = vld [vmem:[#allocation4 + $0xd8] sm:$0xff]
    %v102 = vld [vmem:[#allocation4 + $0xe0] sm:$0xff]
    %v103 = vld [vmem:[#allocation4 + $0xe8] sm:$0xff]
    %v104 = vld [vmem:[#allocation4 + $0xf0] sm:$0xff]
    %v105 = vld [vmem:[#allocation4 + $0xf8] sm:$0xff]
    %v106 = vld [vmem:[#allocation4 + $0x100] sm:$0xff]
    %v107 = vld [vmem:[#allocation4 + $0x108] sm:$0xff]
    %v108 = vld [vmem:[#allocation4 + $0x110] sm:$0xff]
    %v109 = vld [vmem:[#allocation4 + $0x118] sm:$0xff]
    %v110 = vld [vmem:[#allocation4 + $0x120] sm:$0xff]
    %v111 = vld [vmem:[#allocation4 + $0x128] sm:$0xff]
    %v112 = vld [vmem:[#allocation4 + $0x130] sm:$0xff]
    %v113 = vld [vmem:[#allocation4 + $0x138] sm:$0xff]
    %v114 = vld [vmem:[#allocation4 + $0x140] sm:$0xff]
    %v115 = vld [vmem:[#allocation4 + $0x148] sm:$0xff]
    %v116 = vld [vmem:[#allocation4 + $0x150] sm:$0xff]
    %v117 = vld [vmem:[#allocation4 + $0x158] sm:$0xff]
    %v118 = vld [vmem:[#allocation4 + $0x160] sm:$0xff]
    %v119 = vld [vmem:[#allocation4 + $0x168] sm:$0xff]
    %v120 = vld [vmem:[#allocation4 + $0x170] sm:$0xff]
    %v121 = vld [vmem:[#allocation4 + $0x178] sm:$0xff]
    %v122 = vld [vmem:[#allocation4 + $0x180] sm:$0xff]
    %v123 = vld [vmem:[#allocation4 + $0x188] sm:$0xff]
    %v124 = vld [vmem:[#allocation4 + $0x190] sm:$0xff]
    %v125 = vld [vmem:[#allocation4 + $0x198] sm:$0xff]
    %v126 = vld [vmem:[#allocation4 + $0x1a0] sm:$0xff]
    %v127 = vld [vmem:[#allocation4 + $0x1a8] sm:$0xff]
    %v128 = vld [vmem:[#allocation4 + $0x1b0] sm:$0xff]
    %v129 = vld [vmem:[#allocation4 + $0x1b8] sm:$0xff]
    %v130 = vld [vmem:[#allocation4 + $0x1c0] sm:$0xff]
    %v131 = vld [vmem:[#allocation4 + $0x1c8] sm:$0xff]
    %v132 = vld [vmem:[#allocation4 + $0x1d0] sm:$0xff]
    %v133 = vld [vmem:[#allocation4 + $0x1d8] sm:$0xff]
    %v134 = vld [vmem:[#allocation4 + $0x1e0] sm:$0xff]
    %v135 = vld [vmem:[#allocation4 + $0x1e8] sm:$0xff]
    %v136 = vld [vmem:[#allocation4 + $0x1f0] sm:$0xff]
    %v137 = vld [vmem:[#allocation4 + $0x1f8] sm:$0xff]
    %v138 = vld [vmem:[#allocation2] sm:$0x1f]
    %v139 = vld [vmem:[#allocation2 + $0x8] sm:$0x1f]
    %v140 = vld [vmem:[#allocation2 + $0x10] sm:$0x1f]
    %v141 = vld [vmem:[#allocation2 + $0x18] sm:$0x1f]
    %vm142 = vcmask 39936
    %v144 = vsel %vm142, %v71, 0
    %vm146 = vcmask 1044480
    %v148 = vsel %vm146, %v138, 0
    %v151 = vsel %vm146, %v139, 0
    %v154 = vsel %vm146, %v140, 0
    %v157 = vsel %vm146, %v141, 0
    %159 = vmatprep.subr.mxu0 %v151
    %160 = vmatpush1.msra.mxu0 %v148
    %161 = vmatprep.subr.mxu0 0.0
    %162 = vmatpush1.msra.mxu0 0.0
    %163 = vmatprep.subr.mxu0 0.0
    %164 = vmatpush1.msra.mxu0 0.0
    %165 = vmatprep.subr.mxu0 0.0
    %166 = vmatpush1.msra.mxu0 0.0
    %167 = vmatprep.subr.mxu0 0.0
    %168 = vmatpush1.msra.mxu0 0.0
    %169 = vmatprep.subr.mxu0 0.0
    %170 = vmatpush1.msra.mxu0 0.0
    %171 = vmatprep.subr.mxu0 0.0
    %172 = vmatpush1.msra.mxu0 0.0
    %173 = vmatprep.subr.mxu0 0.0
    %174 = vmatpush1.msra.mxu0 0.0
    %175 = vmatprep.subr.mxu0 0.0
    %176 = vmatpush1.msra.mxu0 0.0
    %177 = vmatprep.subr.mxu0 0.0
    %178 = vmatpush1.msra.mxu0 0.0
    %179 = vmatprep.subr.mxu0 0.0
    %180 = vmatpush1.msra.mxu0 0.0
    %181 = vmatprep.subr.mxu0 0.0
    %182 = vmatpush1.msra.mxu0 0.0
    %183 = vmatprep.subr.mxu0 0.0
    %184 = vmatpush1.msra.mxu0 0.0
    %185 = vmatprep.subr.mxu0 0.0
    %186 = vmatpush1.msra.mxu0 0.0
    %187 = vmatprep.subr.mxu0 0.0
    %188 = vmatpush1.msra.mxu0 0.0
    %189 = vmatprep.subr.mxu0 0.0
    %190 = vmatpush1.msra.mxu0 0.0
    %191 = vmatprep.subr.mxu0 0.0
    %192 = vmatpush1.msra.mxu0 0.0
    %193 = vmatprep.subr.mxu0 0.0
    %194 = vmatpush1.msra.mxu0 0.0
    %195 = vmatprep.subr.mxu0 0.0
    %196 = vmatpush1.msra.mxu0 0.0
    %197 = vmatprep.subr.mxu0 0.0
    %198 = vmatpush1.msra.mxu0 0.0
    %199 = vmatprep.subr.mxu0 0.0
    %200 = vmatpush1.msra.mxu0 0.0
    %201 = vmatprep.subr.mxu0 0.0
    %202 = vmatpush1.msra.mxu0 0.0
    %203 = vmatprep.subr.mxu0 0.0
    %204 = vmatpush1.msra.mxu0 0.0
    %205 = vmatprep.subr.mxu0 0.0
    %206 = vmatpush1.msra.mxu0 0.0
    %207 = vmatprep.subr.mxu0 0.0
    %208 = vmatpush1.msra.mxu0 0.0
    %209 = vmatprep.subr.mxu0 0.0
    %210 = vmatpush1.msra.mxu0 0.0
    %211 = vmatprep.subr.mxu0 0.0
    %212 = vmatpush1.msra.mxu0 0.0
    %213 = vmatprep.subr.mxu0 0.0
    %214 = vmatpush1.msra.mxu0 0.0
    %215 = vmatprep.subr.mxu0 0.0
    %216 = vmatpush1.msra.mxu0 0.0
    %217 = vmatprep.subr.mxu0 0.0
    %218 = vmatpush1.msra.mxu0 0.0
    %219 = vmatprep.subr.mxu0 0.0
    %220 = vmatpush1.msra.mxu0 0.0
    %221 = vmatprep.subr.mxu0 0.0
    %222 = vmatpush1.msra.mxu0 0.0
    %223 = vmatprep.mubr.f32.mxu0 0.0
    %224 = vmatmul.mubr.f32.gmra.mrb[0].mxu0 %v144
    %v225 = vpop.f32.mrb[0].mxu0
    %v226 = vadd.f32 0.0, %v225
    %v227 = vpop.f32.mrb[0].mxu0
    %v228 = vadd.f32 0.0, %v227
    %229 = vdwg.mxu0
    %230 = vmatprep.subr.mxu0 %v157
    %231 = vmatpush1.msra.mxu0 %v154
    %232 = vmatprep.subr.mxu0 0.0
    %233 = vmatpush1.msra.mxu0 0.0
    %234 = vmatprep.subr.mxu0 0.0
    %235 = vmatpush1.msra.mxu0 0.0
    %236 = vmatprep.subr.mxu0 0.0
    %237 = vmatpush1.msra.mxu0 0.0
    %238 = vmatprep.subr.mxu0 0.0
    %239 = vmatpush1.msra.mxu0 0.0
    %240 = vmatprep.subr.mxu0 0.0
    %241 = vmatpush1.msra.mxu0 0.0
    %242 = vmatprep.subr.mxu0 0.0
    %243 = vmatpush1.msra.mxu0 0.0
    %244 = vmatprep.subr.mxu0 0.0
    %245 = vmatpush1.msra.mxu0 0.0
    %246 = vmatprep.subr.mxu0 0.0
    %247 = vmatpush1.msra.mxu0 0.0
    %248 = vmatprep.subr.mxu0 0.0
    %249 = vmatpush1.msra.mxu0 0.0
    %250 = vmatprep.subr.mxu0 0.0
    %251 = vmatpush1.msra.mxu0 0.0
    %252 = vmatprep.subr.mxu0 0.0
    %253 = vmatpush1.msra.mxu0 0.0
    %254 = vmatprep.subr.mxu0 0.0
    %255 = vmatpush1.msra.mxu0 0.0
    %256 = vmatprep.subr.mxu0 0.0
    %257 = vmatpush1.msra.mxu0 0.0
    %258 = vmatprep.subr.mxu0 0.0
    %259 = vmatpush1.msra.mxu0 0.0
    %260 = vmatprep.subr.mxu0 0.0
    %261 = vmatpush1.msra.mxu0 0.0
    %262 = vmatprep.subr.mxu0 0.0
    %263 = vmatpush1.msra.mxu0 0.0
    %264 = vmatprep.subr.mxu0 0.0
    %265 = vmatpush1.msra.mxu0 0.0
    %266 = vmatprep.subr.mxu0 0.0
    %267 = vmatpush1.msra.mxu0 0.0
    %268 = vmatprep.subr.mxu0 0.0
    %269 = vmatpush1.msra.mxu0 0.0
    %270 = vmatprep.subr.mxu0 0.0
    %271 = vmatpush1.msra.mxu0 0.0
    %272 = vmatprep.subr.mxu0 0.0
    %273 = vmatpush1.msra.mxu0 0.0
    %274 = vmatprep.subr.mxu0 0.0
    %275 = vmatpush1.msra.mxu0 0.0
    %276 = vmatprep.subr.mxu0 0.0
    %277 = vmatpush1.msra.mxu0 0.0
    %278 = vmatprep.subr.mxu0 0.0
    %279 = vmatpush1.msra.mxu0 0.0
    %280 = vmatprep.subr.mxu0 0.0
    %281 = vmatpush1.msra.mxu0 0.0
    %282 = vmatprep.subr.mxu0 0.0
    %283 = vmatpush1.msra.mxu0 0.0
    %284 = vmatprep.subr.mxu0 0.0
    %285 = vmatpush1.msra.mxu0 0.0
    %286 = vmatprep.subr.mxu0 0.0
    %287 = vmatpush1.msra.mxu0 0.0
    %288 = vmatprep.subr.mxu0 0.0
    %289 = vmatpush1.msra.mxu0 0.0
    %290 = vmatprep.subr.mxu0 0.0
    %291 = vmatpush1.msra.mxu0 0.0
    %292 = vmatprep.subr.mxu0 0.0
    %293 = vmatpush1.msra.mxu0 0.0
    %294 = vmatprep.mubr.f32.mxu0 0.0
    %295 = vmatmul.mubr.f32.gmra.mrb[0].mxu0 %v144
    %v296 = vpop.f32.mrb[0].mxu0
    %v297 = vadd.f32 0.0, %v296
    %v298 = vpop.f32.mrb[0].mxu0
    %v299 = vadd.f32 0.0, %v298
    %300 = vdwg.mxu0
    %301 = vmatprep.subr.mxu0 %v75
    %302 = vmatpush1.msra.mxu0 %v74
    %303 = vmatprep.subr.mxu0 %v79
    %304 = vmatpush1.msra.mxu0 %v78
    %305 = vmatprep.subr.mxu0 %v83
    %306 = vmatpush1.msra.mxu0 %v82
    %307 = vmatprep.subr.mxu0 %v87
    %308 = vmatpush1.msra.mxu0 %v86
    %309 = vmatprep.subr.mxu0 %v91
    %310 = vmatpush1.msra.mxu0 %v90
    %311 = vmatprep.subr.mxu0 %v95
    %312 = vmatpush1.msra.mxu0 %v94
    %313 = vmatprep.subr.mxu0 %v99
    %314 = vmatpush1.msra.mxu0 %v98
    %315 = vmatprep.subr.mxu0 %v103
    %316 = vmatpush1.msra.mxu0 %v102
    %317 = vmatprep.subr.mxu0 %v107
    %318 = vmatpush1.msra.mxu0 %v106
    %319 = vmatprep.subr.mxu0 %v111
    %320 = vmatpush1.msra.mxu0 %v110
    %321 = vmatprep.subr.mxu0 %v115
    %322 = vmatpush1.msra.mxu0 %v114
    %323 = vmatprep.subr.mxu0 %v119
    %324 = vmatpush1.msra.mxu0 %v118
    %325 = vmatprep.subr.mxu0 %v123
    %326 = vmatpush1.msra.mxu0 %v122
    %327 = vmatprep.subr.mxu0 %v127
    %328 = vmatpush1.msra.mxu0 %v126
    %329 = vmatprep.subr.mxu0 %v131
    %330 = vmatpush1.msra.mxu0 %v130
    %331 = vmatprep.subr.mxu0 %v135
    %332 = vmatpush1.msra.mxu0 %v134
    %333 = vmatprep.subr.mxu0 0.0
    %334 = vmatpush1.msra.mxu0 0.0
    %335 = vmatprep.subr.mxu0 0.0
    %336 = vmatpush1.msra.mxu0 0.0
    %337 = vmatprep.subr.mxu0 0.0
    %338 = vmatpush1.msra.mxu0 0.0
    %339 = vmatprep.subr.mxu0 0.0
    %340 = vmatpush1.msra.mxu0 0.0
    %341 = vmatprep.subr.mxu0 0.0
    %342 = vmatpush1.msra.mxu0 0.0
    %343 = vmatprep.subr.mxu0 0.0
    %344 = vmatpush1.msra.mxu0 0.0
    %345 = vmatprep.subr.mxu0 0.0
    %346 = vmatpush1.msra.mxu0 0.0
    %347 = vmatprep.subr.mxu0 0.0
    %348 = vmatpush1.msra.mxu0 0.0
    %349 = vmatprep.subr.mxu0 0.0
    %350 = vmatpush1.msra.mxu0 0.0
    %351 = vmatprep.subr.mxu0 0.0
    %352 = vmatpush1.msra.mxu0 0.0
    %353 = vmatprep.subr.mxu0 0.0
    %354 = vmatpush1.msra.mxu0 0.0
    %355 = vmatprep.subr.mxu0 0.0
    %356 = vmatpush1.msra.mxu0 0.0
    %357 = vmatprep.subr.mxu0 0.0
    %358 = vmatpush1.msra.mxu0 0.0
    %359 = vmatprep.subr.mxu0 0.0
    %360 = vmatpush1.msra.mxu0 0.0
    %361 = vmatprep.subr.mxu0 0.0
    %362 = vmatpush1.msra.mxu0 0.0
    %363 = vmatprep.subr.mxu0 0.0
    %364 = vmatpush1.msra.mxu0 0.0
    %365 = vmatprep.mubr.f32.mxu0 0.0
    %366 = vmatmul.mubr.f32.gmra.mrb[0].mxu0 %v72
    %v367 = vpop.f32.mrb[0].mxu0
    %v368 = vadd.f32 %v226, %v367
    %v369 = vpop.f32.mrb[0].mxu0
    %v370 = vadd.f32 %v228, %v369
    %371 = vdwg.mxu0
    %372 = vmatprep.subr.mxu0 %v77
    %373 = vmatpush1.msra.mxu0 %v76
    %374 = vmatprep.subr.mxu0 %v81
    %375 = vmatpush1.msra.mxu0 %v80
    %376 = vmatprep.subr.mxu0 %v85
    %377 = vmatpush1.msra.mxu0 %v84
    %378 = vmatprep.subr.mxu0 %v89
    %379 = vmatpush1.msra.mxu0 %v88
    %380 = vmatprep.subr.mxu0 %v93
    %381 = vmatpush1.msra.mxu0 %v92
    %382 = vmatprep.subr.mxu0 %v97
    %383 = vmatpush1.msra.mxu0 %v96
    %384 = vmatprep.subr.mxu0 %v101
    %385 = vmatpush1.msra.mxu0 %v100
    %386 = vmatprep.subr.mxu0 %v105
    %387 = vmatpush1.msra.mxu0 %v104
    %388 = vmatprep.subr.mxu0 %v109
    %389 = vmatpush1.msra.mxu0 %v108
    %390 = vmatprep.subr.mxu0 %v113
    %391 = vmatpush1.msra.mxu0 %v112
    %392 = vmatprep.subr.mxu0 %v117
    %393 = vmatpush1.msra.mxu0 %v116
    %394 = vmatprep.subr.mxu0 %v121
    %395 = vmatpush1.msra.mxu0 %v120
    %396 = vmatprep.subr.mxu0 %v125
    %397 = vmatpush1.msra.mxu0 %v124
    %398 = vmatprep.subr.mxu0 %v129
    %399 = vmatpush1.msra.mxu0 %v128
    %400 = vmatprep.subr.mxu0 %v133
    %401 = vmatpush1.msra.mxu0 %v132
    %402 = vmatprep.subr.mxu0 %v137
    %403 = vmatpush1.msra.mxu0 %v136
    %404 = vmatprep.subr.mxu0 0.0
    %405 = vmatpush1.msra.mxu0 0.0
    %406 = vmatprep.subr.mxu0 0.0
    %407 = vmatpush1.msra.mxu0 0.0
    %408 = vmatprep.subr.mxu0 0.0
    %409 = vmatpush1.msra.mxu0 0.0
    %410 = vmatprep.subr.mxu0 0.0
    %411 = vmatpush1.msra.mxu0 0.0
    %412 = vmatprep.subr.mxu0 0.0
    %413 = vmatpush1.msra.mxu0 0.0
    %414 = vmatprep.subr.mxu0 0.0
    %415 = vmatpush1.msra.mxu0 0.0
    %416 = vmatprep.subr.mxu0 0.0
    %417 = vmatpush1.msra.mxu0 0.0
    %418 = vmatprep.subr.mxu0 0.0
    %419 = vmatpush1.msra.mxu0 0.0
    %420 = vmatprep.subr.mxu0 0.0
    %421 = vmatpush1.msra.mxu0 0.0
    %422 = vmatprep.subr.mxu0 0.0
    %423 = vmatpush1.msra.mxu0 0.0
    %424 = vmatprep.subr.mxu0 0.0
    %425 = vmatpush1.msra.mxu0 0.0
    %426 = vmatprep.subr.mxu0 0.0
    %427 = vmatpush1.msra.mxu0 0.0
    %428 = vmatprep.subr.mxu0 0.0
    %429 = vmatpush1.msra.mxu0 0.0
    %430 = vmatprep.subr.mxu0 0.0
    %431 = vmatpush1.msra.mxu0 0.0
    %432 = vmatprep.subr.mxu0 0.0
    %433 = vmatpush1.msra.mxu0 0.0
    %434 = vmatprep.subr.mxu0 0.0
    %435 = vmatpush1.msra.mxu0 0.0
    %436 = vmatprep.mubr.f32.mxu0 0.0
    %437 = vmatmul.mubr.f32.gmra.mrb[0].mxu0 %v72
    %v438 = vpop.f32.mrb[0].mxu0
    %v439 = vadd.f32 %v297, %v438
    %v440 = vpop.f32.mrb[0].mxu0
    %v441 = vadd.f32 %v299, %v440
    %442 = vdwg.mxu0
    %v443 = vld [vmem:[%s5] sm:$0xf]
    %v445 = vlaneseq
    %v446 = vshrl.u32 %v445, 7
    %v447 = vsub.s32 0, %v446
    %v448 = vrot.slane %v443, %v447
    %v449 = vlaneseq
    %v450 = vshrl.u32 %v449, 7
    %v451 = vsub.s32 1, %v450
    %v452 = vrot.slane %v443, %v451
    %v453 = vlaneseq
    %v454 = vshrl.u32 %v453, 7
    %v455 = vsub.s32 2, %v454
    %v456 = vrot.slane %v443, %v455
    %v457 = vlaneseq
    %v458 = vshrl.u32 %v457, 7
    %v459 = vsub.s32 3, %v458
    %v460 = vrot.slane %v443, %v459
    %v465 = vadd.f32 %v368, %v448
    %v466 = vadd.f32 %v370, %v452
    %v467 = vadd.f32 %v439, %v456
    %v468 = vadd.f32 %v441, %v460
    %v469 = vmul.f32 %v465, 0.5
    %v470 = vtanh.pop %v469
    %v471 = vadd.f32 %v470, 1.0
    %v472 = vmul.f32 %v471, 0.5
    %v473 = vmul.f32 %v466, 0.5
    %v474 = vtanh.pop %v473
    %v475 = vadd.f32 %v474, 1.0
    %v476 = vmul.f32 %v475, 0.5
    %v477 = vtanh.pop %v467
    %v478 = vmul.f32 %v468, 0.5
    %v479 = vtanh.pop %v478
    %v480 = vadd.f32 %v479, 1.0
    %v481 = vmul.f32 %v480, 0.5
    %v482 = vmul.f32 %v476, %v73
    %v483 = vmul.f32 %v472, %v477
    %v484 = vadd.f32 %v482, %v483
    %v485 = vtanh.pop %v484
    %v486 = vmul.f32 %v481, %v485
    %v487 = vld [vmem:[#allocation6] sm:$0xff]
    %v488 = vld [vmem:[#allocation6 + $0x8] sm:$0xff]
    %v489 = vld [vmem:[#allocation6 + $0x10] sm:$0xff]
    %v490 = vld [vmem:[#allocation6 + $0x18] sm:$0xff]
    %v491 = vld [vmem:[#allocation6 + $0x20] sm:$0xff]
    %v492 = vld [vmem:[#allocation6 + $0x28] sm:$0xff]
    %v493 = vld [vmem:[#allocation6 + $0x30] sm:$0xff]
    %v494 = vld [vmem:[#allocation6 + $0x38] sm:$0xff]
    %v495 = vld [vmem:[#allocation6 + $0x40] sm:$0xff]
    %v496 = vld [vmem:[#allocation6 + $0x48] sm:$0xff]
    %v497 = vld [vmem:[#allocation6 + $0x50] sm:$0xff]
    %v498 = vld [vmem:[#allocation6 + $0x58] sm:$0xff]
    %v499 = vld [vmem:[#allocation6 + $0x60] sm:$0xff]
    %v500 = vld [vmem:[#allocation6 + $0x68] sm:$0xff]
    %v501 = vld [vmem:[#allocation6 + $0x70] sm:$0xff]
    %v502 = vld [vmem:[#allocation6 + $0x78] sm:$0xff]
    %v503 = vld [vmem:[%s7] sm:$0x1]
    %v505 = vlaneseq
    %v506 = vshrl.u32 %v505, 7
    %v507 = vsub.s32 0, %v506
    %v508 = vrot.slane %v503, %v507
    %510 = vmatprep.subr.mxu0 0.0
    %511 = vmatpush1.msra.mxu0 %v487
    %512 = vmatprep.subr.mxu0 0.0
    %513 = vmatpush1.msra.mxu0 %v488
    %514 = vmatprep.subr.mxu0 0.0
    %515 = vmatpush1.msra.mxu0 %v489
    %516 = vmatprep.subr.mxu0 0.0
    %517 = vmatpush1.msra.mxu0 %v490
    %518 = vmatprep.subr.mxu0 0.0
    %519 = vmatpush1.msra.mxu0 %v491
    %520 = vmatprep.subr.mxu0 0.0
    %521 = vmatpush1.msra.mxu0 %v492
    %522 = vmatprep.subr.mxu0 0.0
    %523 = vmatpush1.msra.mxu0 %v493
    %524 = vmatprep.subr.mxu0 0.0
    %525 = vmatpush1.msra.mxu0 %v494
    %526 = vmatprep.subr.mxu0 0.0
    %527 = vmatpush1.msra.mxu0 %v495
    %528 = vmatprep.subr.mxu0 0.0
    %529 = vmatpush1.msra.mxu0 %v496
    %530 = vmatprep.subr.mxu0 0.0
    %531 = vmatpush1.msra.mxu0 %v497
    %532 = vmatprep.subr.mxu0 0.0
    %533 = vmatpush1.msra.mxu0 %v498
    %534 = vmatprep.subr.mxu0 0.0
    %535 = vmatpush1.msra.mxu0 %v499
    %536 = vmatprep.subr.mxu0 0.0
    %537 = vmatpush1.msra.mxu0 %v500
    %538 = vmatprep.subr.mxu0 0.0
    %539 = vmatpush1.msra.mxu0 %v501
    %540 = vmatprep.subr.mxu0 0.0
    %541 = vmatpush1.msra.mxu0 %v502
    %542 = vmatprep.subr.mxu0 0.0
    %543 = vmatpush1.msra.mxu0 0.0
    %544 = vmatprep.subr.mxu0 0.0
    %545 = vmatpush1.msra.mxu0 0.0
    %546 = vmatprep.subr.mxu0 0.0
    %547 = vmatpush1.msra.mxu0 0.0
    %548 = vmatprep.subr.mxu0 0.0
    %549 = vmatpush1.msra.mxu0 0.0
    %550 = vmatprep.subr.mxu0 0.0
    %551 = vmatpush1.msra.mxu0 0.0
    %552 = vmatprep.subr.mxu0 0.0
    %553 = vmatpush1.msra.mxu0 0.0
    %554 = vmatprep.subr.mxu0 0.0
    %555 = vmatpush1.msra.mxu0 0.0
    %556 = vmatprep.subr.mxu0 0.0
    %557 = vmatpush1.msra.mxu0 0.0
    %558 = vmatprep.subr.mxu0 0.0
    %559 = vmatpush1.msra.mxu0 0.0
    %560 = vmatprep.subr.mxu0 0.0
    %561 = vmatpush1.msra.mxu0 0.0
    %562 = vmatprep.subr.mxu0 0.0
    %563 = vmatpush1.msra.mxu0 0.0
    %564 = vmatprep.subr.mxu0 0.0
    %565 = vmatpush1.msra.mxu0 0.0
    %566 = vmatprep.subr.mxu0 0.0
    %567 = vmatpush1.msra.mxu0 0.0
    %568 = vmatprep.subr.mxu0 0.0
    %569 = vmatpush1.msra.mxu0 0.0
    %570 = vmatprep.subr.mxu0 0.0
    %571 = vmatpush1.msra.mxu0 0.0
    %572 = vmatprep.subr.mxu0 0.0
    %573 = vmatpush1.msra.mxu0 0.0
    %574 = vmatprep.mubr.f32.mxu0 0.0
    %575 = vmatmul.mubr.f32.gmra.mrb[0].mxu0 %v486
    %v576 = vpop.f32.mrb[0].mxu0
    %v577 = vadd.f32 %v508, %v576
    %v578 = vpop.f32.mrb[0].mxu0
    %579 = vdwg.mxu0
    %580 = vst [vmem:[%s8] sm:$0x3] %v577
    %581 = vst [vmem:[%s9] sm:$0x3] %v486
    %582 = vst [vmem:[%s10] sm:$0x3] %v484
    // Predicated region
    $region46: #{decoder_forward.1} parent=1 // pred_check
      _
    $region47: #{decoder_forward.1} parent=1 // pred_check_branch
      %584 = sbr.rel (0) target = $region49
    $region48: #{decoder_forward.1} parent=1 // pred_region
      _
    $region49: #{decoder_forward.1} parent=1 // pred_fallthru
      _
    // Predicated region
    $region50: #{decoder_forward.1} parent=1 // pred_check
      _
    $region51: #{decoder_forward.1} parent=1 // pred_check_branch
      %586 = sbr.rel (0) target = $region53
    $region52: #{decoder_forward.1} parent=1 // pred_region
      _
    $region53: #{decoder_forward.1} parent=1 // pred_fallthru
      _
    // Predicated region
    $region54: #{decoder_forward.1} parent=1 // pred_check
      _
    $region55: #{decoder_forward.1} parent=1 // pred_check_branch
      %588 = sbr.rel (0) target = $region57
    $region56: #{decoder_forward.1} parent=1 // pred_region
      _
    $region57: #{decoder_forward.1} parent=1 // pred_fallthru
      _
    // Predicated region
    $region58: #{decoder_forward.1} parent=1 // pred_check
      _
    $region59: #{decoder_forward.1} parent=1 // pred_check_branch
      %590 = sbr.rel (0) target = $region61
    $region60: #{decoder_forward.1} parent=1 // pred_region
      _
    $region61: #{decoder_forward.1} parent=1 // pred_fallthru
      _
    // Predicated region
    $region62: #{decoder_forward.1} parent=1 // pred_check
      _
    $region63: #{decoder_forward.1} parent=1 // pred_check_branch
      %592 = sbr.rel (0) target = $region65
    $region64: #{decoder_forward.1} parent=1 // pred_region
      _
    $region65: #{decoder_forward.1} parent=1 // pred_fallthru
      _
    // Predicated region
    $region66: #{decoder_forward.1} parent=1 // pred_check
      _
    $region67: #{decoder_forward.1} parent=1 // pred_check_branch
      %594 = sbr.rel (0) target = $region69
    $region68: #{decoder_forward.1} parent=1 // pred_region
      _
    $region69: #{decoder_forward.1} parent=1 // pred_fallthru
      _
    %595 = vsyncpa [#allocation3], 1
    %596 = vsyncpa [#allocation5], 1

</llo_original>
